<compile_context>
chip_gen: v7x
topology: tpu7x:2x2x1
jax: 0.10.0
libtpu: 0.0.40
codegen_flags: <defaults>
</compile_context>

<pallas_src>
import functools
import math

import jax
import jax.numpy as jnp
from jax import lax
from jax.experimental import pallas as pl
from jax.experimental.pallas import tpu as pltpu


def _cdiv(a, b):
    return (a + b - 1) // b


def _round_up(a, m):
    return _cdiv(a, m) * m


def _vmem_budget_bytes():
    """Generation-aware scoped-VMEM budget (fraction of physical capacity)."""
    cap = 64 * 1024 * 1024            # conservative default (v7x physical VMEM)
    try:
        info = pltpu.get_tpu_info()
        cap = int(getattr(info, "vmem_capacity_bytes", cap))
    except Exception:
        pass
    return int(min(cap * 3 // 4, 96 * 1024 * 1024))


def _simloss_kernel(y_ref, x_ref, out_ref, *, epsilon, r, n_total, block_rows,
                    num_groups, tiles_per_chunk):
    # y_ref : (1, 128, num_groups) f32   labels, lane-dense per-group columns
    # x_ref : (block_rows, C)      f32/bf16 class scores
    # out_ref: (1, 8, 128)         f32   per-chunk partial sum (broadcast value)
    c_idx = pl.program_id(0)          # chunk   (parallel axis -> megacore)
    t_idx = pl.program_id(1)          # tile    (reduction axis, "arbitrary")

    @pl.when(t_idx == 0)
    def _():
        out_ref[...] = jnp.zeros_like(out_ref)

    # Logical (unclamped) tile index; phantom tiles (>= real tile count) have
    # base_row >= n_total so every row is masked out below.
    tile_idx = c_idx * tiles_per_chunk + t_idx
    base_row = tile_idx * block_rows

    n_cls = x_ref.shape[1]
    # Hoisted per-tile constants (converted to f32 once, not per element).
    cls_f = lax.broadcasted_iota(jnp.int32, (128, n_cls), 1).astype(jnp.float32)
    row_iota = lax.broadcasted_iota(jnp.int32, (128, 1), 0)
    y_f = y_ref[0]                                        # (128, num_groups) f32
    ln_r = math.log(r) if r > 0.0 else 0.0                # trace-time constant

    acc = jnp.float32(0.0)
    # Static (unrolled) loop over 128-row groups: every slice below is static,
    # so no dynamic lane indexing / relayout is required.
    for g in range(num_groups):
        x_slab = x_ref[pl.ds(g * 128, 128), :].astype(jnp.float32)   # (128, C)
        y_col = y_f[:, g:g + 1]                                      # (128, 1)

        dist = jnp.abs(cls_f - y_col)                                # (128, C)
        if r > 0.0:
            # r ** |i - y|  ==  exp(|i - y| * ln r)   (EUP exp, VPU mul)
            w = jnp.exp(dist * jnp.float32(ln_r))
        else:
            # r == 0: w[y, i] = 1 iff i == y  (0**0 == 1 in the torch table)
            w = (dist == 0.0).astype(jnp.float32)

        s = jnp.sum(w * x_slab, axis=1, keepdims=True) + jnp.float32(epsilon)

        # Mask rows past the true batch size (overhang / phantom tiles).
        # NOTE: must stay a select (jnp.where) so garbage x (NaN/Inf) in the
        # overhang region never reaches the log.
        row = base_row + g * 128 + row_iota
        s_safe = jnp.where(row < n_total, s, jnp.float32(1.0))       # -log(1)=0

        acc = acc + jnp.sum(-jnp.log(s_safe))

    out_ref[...] += acc                                   # broadcast scalar add


def sim_loss(x, y, *, reduction_factor, epsilon=1e-8, block_rows=None):
    """Pallas TPU SimLoss forward: mean_n(-log(sum_i r**|i-y_n| * x[n,i] + eps))."""
    assert 0.0 <= reduction_factor < 1.0
    x = jnp.asarray(x)
    if x.dtype not in (jnp.float32, jnp.bfloat16):
        x = x.astype(jnp.float32)
    n, c = x.shape
    y = jnp.asarray(y, jnp.int32).reshape(n)

    # ---------------- tile sizing (bytes-driven, VMEM-budgeted) ----------------
    itemsize = x.dtype.itemsize
    lane_c = _round_up(c, 128)                     # VMEM lanes are 128-padded
    row_bytes = lane_c * itemsize                  # one x row in VMEM
    budget = _vmem_budget_bytes()

    target_tile_bytes = 4 * 1024 * 1024            # ~4 MiB x tile per buffer
    max_groups = 32                                # cap unrolled group loop (<=4096 rows)
    headroom = 2 * 1024 * 1024 + 2 * 128 * 128 * 4 # misc + double-buffered y slab

    tn = target_tile_bytes // row_bytes
    tn = min(tn, max(128, (budget - headroom) // (2 * row_bytes)))  # 2x buffered x
    tn = min(tn, max_groups * 128, _round_up(n, 128))
    if block_rows is not None:
        tn = min(tn, _round_up(block_rows, 128))
    tn = max(128, (tn // 128) * 128)               # multiple of 128 rows
    num_groups = tn // 128

    num_tiles = _cdiv(n, tn)
    num_chunks = 2 if num_tiles >= 2 else 1        # feed both v7x TensorCores
    tiles_per_chunk = _cdiv(num_tiles, num_chunks)

    # -------- label slab: y3[T, l, g] = y[T*tn + g*128 + l], f32, tiny ---------
    n_pad = num_tiles * tn
    y_pad = jnp.pad(y, (0, n_pad - n))
    y3 = (y_pad.reshape(num_tiles, num_groups, 128)
               .transpose(0, 2, 1)
               .astype(jnp.float32))               # (num_tiles, 128, num_groups)

    kernel = functools.partial(
        _simloss_kernel,
        epsilon=float(epsilon),
        r=float(reduction_factor),
        n_total=int(n),
        block_rows=tn,
        num_groups=num_groups,
        tiles_per_chunk=tiles_per_chunk,
    )

    def y_map(ci, ti):
        t = jnp.minimum(ci * tiles_per_chunk + ti, num_tiles - 1)
        return (t, 0, 0)

    def x_map(ci, ti):
        t = jnp.minimum(ci * tiles_per_chunk + ti, num_tiles - 1)
        return (t, 0)

    def o_map(ci, ti):
        return (ci, 0, 0)

    out = pl.pallas_call(
        kernel,
        out_shape=jax.ShapeDtypeStruct((num_chunks, 8, 128), jnp.float32),
        grid=(num_chunks, tiles_per_chunk),
        in_specs=[
            pl.BlockSpec((1, 128, num_groups), y_map),   # label slab (dense)
            pl.BlockSpec((tn, c), x_map),                # x class scores
        ],
        out_specs=pl.BlockSpec((1, 8, 128), o_map),      # per-chunk partial sum
        compiler_params=pltpu.CompilerParams(
            dimension_semantics=("parallel", "arbitrary"),
            vmem_limit_bytes=budget),
    )(y3, x)

    partial_sums = out[:, 0, 0]                          # (num_chunks,)
    return jnp.sum(partial_sums) / jnp.float32(n)


# ---------------------------------------------------------------------------
# Pure-JAX reference (mirrors the PyTorch module exactly).
# ---------------------------------------------------------------------------
def generate_w(number_of_classes, reduction_factor):
    assert 0.0 <= reduction_factor < 1.0
    idx = jnp.arange(number_of_classes)
    dist = jnp.abs(idx[:, None] - idx[None, :]).astype(jnp.float32)
    return jnp.power(jnp.float32(reduction_factor), dist)        # (C, C)


def sim_loss_ref(x, y, w, epsilon=1e-8):
    w_y = w[y, :]
    return jnp.mean(-jnp.log(jnp.sum(w_y * x.astype(jnp.float32), axis=1)
                             + epsilon))


if __name__ == "__main__":
    key = jax.random.PRNGKey(0)
    kx, ky, kx2, ky2, kx3, ky3 = jax.random.split(key, 6)
    epsilon = 1e-8

    # Test 1: small shapes consistent with the module (batch=8, classes=16).
    number_of_classes = 16
    reduction_factor = 0.5
    batch = 8
    logits = jax.random.normal(kx, (batch, number_of_classes), dtype=jnp.float32)
    x = jax.nn.softmax(logits, axis=-1)                       # class probabilities
    y = jax.random.randint(ky, (batch,), 0, number_of_classes, dtype=jnp.int32)

    out = sim_loss(x, y, reduction_factor=reduction_factor, epsilon=epsilon)
    out = jax.block_until_ready(out)
    ref = sim_loss_ref(x, y, generate_w(number_of_classes, reduction_factor),
                       epsilon=epsilon)
    assert jnp.allclose(out, ref, rtol=1e-5, atol=1e-6), (out, ref)

    # Test 2: non-divisible batch, multiple tiles and both grid chunks
    # (exercises accumulation, phantom-tile masking, remainder masking).
    n2, c2, r2 = 300, 10, 0.3
    logits2 = jax.random.normal(kx2, (n2, c2), dtype=jnp.float32)
    x2 = jax.nn.softmax(logits2, axis=-1)
    y2 = jax.random.randint(ky2, (n2,), 0, c2, dtype=jnp.int32)

    out2 = sim_loss(x2, y2, reduction_factor=r2, epsilon=epsilon, block_rows=128)
    out2 = jax.block_until_ready(out2)
    ref2 = sim_loss_ref(x2, y2, generate_w(c2, r2), epsilon=epsilon)
    assert jnp.allclose(out2, ref2, rtol=1e-5, atol=1e-6), (out2, ref2)

    # Test 3: bf16 input path (halved HBM traffic), looser tolerance vs f32 ref.
    n3, c3, r3 = 256, 32, 0.7
    logits3 = jax.random.normal(kx3, (n3, c3), dtype=jnp.float32)
    x3 = jax.nn.softmax(logits3, axis=-1).astype(jnp.bfloat16)
    y3 = jax.random.randint(ky3, (n3,), 0, c3, dtype=jnp.int32)

    out3 = sim_loss(x3, y3, reduction_factor=r3, epsilon=epsilon)
    out3 = jax.block_until_ready(out3)
    ref3 = sim_loss_ref(x3, y3, generate_w(c3, r3), epsilon=epsilon)
    assert jnp.allclose(out3, ref3, rtol=5e-2, atol=5e-2), (out3, ref3)

    print("KERNEL_OK")
</pallas_src>

<mosaic_0001>
module attributes {stable_mosaic.version = 11 : i64} {
  func.func @_simloss_kernel(%arg0: i32, %arg1: i32, %arg2: memref<1x128x1xf32, #tpu.memory_space<vmem>>, %arg3: memref<128x16xf32, #tpu.memory_space<vmem>>, %arg4: memref<1x8x128xf32, #tpu.memory_space<vmem>>) attributes {dimension_semantics = [#tpu.dimension_semantics<parallel>, #tpu.dimension_semantics<arbitrary>], iteration_bounds = array<i64: 1, 1>, scalar_prefetch = 0 : i64, scratch_operands = 0 : i64, tpu.core_type = #tpu.core_type<tc>, window_params = [{transform_indices = @transform_0, window_bounds = array<i64: 1, 128, 1>}, {transform_indices = @transform_1, window_bounds = array<i64: 128, 16>}, {transform_indices = @transform_2, window_bounds = array<i64: 1, 8, 128>}]} {
    %c0_i32 = arith.constant 0 : i32
    %0 = arith.cmpi eq, %arg1, %c0_i32 : i32
    %1 = arith.extui %0 : i1 to i32
    %c0_i32_0 = arith.constant 0 : i32
    %2 = arith.cmpi ne, %1, %c0_i32_0 : i32
    scf.if %2 {
      %cst_18 = arith.constant 0.000000e+00 : f32
      %42 = vector.broadcast %cst_18 : f32 to vector<1x8x128xf32>
      %c0_19 = arith.constant 0 : index
      %c0_20 = arith.constant 0 : index
      %c0_21 = arith.constant 0 : index
      %43 = vector.load %arg4[%c0_19, %c0_20, %c0_21] : memref<1x8x128xf32, #tpu.memory_space<vmem>>, vector<1x8x128xf32>
      tpu.vector_store %arg4[%c0_19, %c0_20, %c0_21], %42 {strides = array<i32>} : memref<1x8x128xf32, #tpu.memory_space<vmem>>, vector<1x8x128xf32>,
    } else {
    }
    %c1_i32 = arith.constant 1 : i32
    %3 = arith.muli %arg0, %c1_i32 : i32
    %4 = arith.addi %3, %arg1 : i32
    %c128_i32 = arith.constant 128 : i32
    %5 = arith.muli %4, %c128_i32 : i32
    %6 = tpu.iota {dimensions = array<i32: 1>} : vector<128x16xi32>
    %7 = arith.sitofp %6 : vector<128x16xi32> to vector<128x16xf32>
    %8 = tpu.iota {dimensions = array<i32: 0>} : vector<128x1xi32>
    %c0 = arith.constant 0 : index
    %c0_1 = arith.constant 0 : index
    %c0_2 = arith.constant 0 : index
    %9 = vector.load %arg2[%c0, %c0_1, %c0_2] : memref<1x128x1xf32, #tpu.memory_space<vmem>>, vector<1x128x1xf32>
    %10 = vector.shape_cast %9 : vector<1x128x1xf32> to vector<128x1xf32>
    %c0_3 = arith.constant 0 : index
    %c0_4 = arith.constant 0 : index
    %11 = vector.load %arg3[%c0_3, %c0_4] : memref<128x16xf32, #tpu.memory_space<vmem>>, vector<128x16xf32>
    %12 = vector.broadcast %10 : vector<128x1xf32> to vector<128x16xf32>
    %13 = arith.subf %7, %12 : vector<128x16xf32>
    %14 = math.absf %13 : vector<128x16xf32>
    %cst = arith.constant -0.693147182 : f32
    %15 = vector.broadcast %cst : f32 to vector<128x16xf32>
    %16 = arith.mulf %14, %15 : vector<128x16xf32>
    %17 = math.exp %16 : vector<128x16xf32>
    %18 = arith.mulf %17, %11 : vector<128x16xf32>
    %cst_5 = arith.constant dense<0.000000e+00> : vector<128xf32>
    %19 = vector.multi_reduction <add>, %18, %cst_5 [1] : vector<128x16xf32> to vector<128xf32>
    %20 = vector.shape_cast %19 : vector<128xf32> to vector<128x1xf32>
    %cst_6 = arith.constant 9.99999993E-9 : f32
    %21 = vector.broadcast %cst_6 : f32 to vector<128x1xf32>
    %22 = arith.addf %20, %21 : vector<128x1xf32>
    %c0_i32_7 = arith.constant 0 : i32
    %23 = arith.addi %5, %c0_i32_7 : i32
    %24 = vector.broadcast %23 : i32 to vector<128x1xi32>
    %25 = arith.addi %24, %8 : vector<128x1xi32>
    %c8_i32 = arith.constant 8 : i32
    %26 = vector.broadcast %c8_i32 : i32 to vector<128x1xi32>
    %27 = arith.cmpi slt, %25, %26 : vector<128x1xi32>
    %cst_8 = arith.constant 1.000000e+00 : f32
    %28 = vector.broadcast %cst_8 : f32 to vector<128x1xf32>
    %29 = arith.select %27, %22, %28 : vector<128x1xi1>, vector<128x1xf32>
    %30 = math.log %29 : vector<128x1xf32>
    %cst_9 = arith.constant 0.000000e+00 : f32
    %31 = vector.broadcast %cst_9 : f32 to vector<128x1xf32>
    %32 = arith.subf %31, %30 : vector<128x1xf32>
    %33 = vector.shape_cast %32 : vector<128x1xf32> to vector<1x128x1xf32>
    %cst_10 = arith.constant dense<0.000000e+00> : vector<1xf32>
    %34 = vector.multi_reduction <add>, %33, %cst_10 [1, 2] : vector<1x128x1xf32> to vector<1xf32>
    %35 = vector.shape_cast %34 : vector<1xf32> to vector<1x1x1xf32>
    %36 = vector.extract %35[0, 0, 0] : f32 from vector<1x1x1xf32>
    %cst_11 = arith.constant 0.000000e+00 : f32
    %37 = arith.addf %cst_11, %36 : f32
    %c0_12 = arith.constant 0 : index
    %c0_13 = arith.constant 0 : index
    %c0_14 = arith.constant 0 : index
    %38 = vector.load %arg4[%c0_12, %c0_13, %c0_14] : memref<1x8x128xf32, #tpu.memory_space<vmem>>, vector<1x8x128xf32>
    %39 = vector.broadcast %37 : f32 to vector<1x8x128xf32>
    %40 = arith.addf %38, %39 : vector<1x8x128xf32>
    %c0_15 = arith.constant 0 : index
    %c0_16 = arith.constant 0 : index
    %c0_17 = arith.constant 0 : index
    %41 = vector.load %arg4[%c0_15, %c0_16, %c0_17] : memref<1x8x128xf32, #tpu.memory_space<vmem>>, vector<1x8x128xf32>
    tpu.vector_store %arg4[%c0_15, %c0_16, %c0_17], %40 {strides = array<i32>} : memref<1x8x128xf32, #tpu.memory_space<vmem>>, vector<1x8x128xf32>,
    return
  }
  func.func @transform_0(%arg0: i32, %arg1: i32) -> (i32, i32, i32) {
    %c1_i32 = arith.constant 1 : i32
    %0 = arith.muli %arg0, %c1_i32 : i32
    %1 = arith.addi %0, %arg1 : i32
    %c0_i32 = arith.constant 0 : i32
    %2 = arith.minsi %1, %c0_i32 : i32
    %c0_i32_0 = arith.constant 0 : i32
    %c0_i32_1 = arith.constant 0 : i32
    %c0_i32_2 = arith.constant 0 : i32
    return %2, %c0_i32_0, %c0_i32_1 : i32, i32, i32
  }
  func.func @transform_1(%arg0: i32, %arg1: i32) -> (i32, i32) {
    %c1_i32 = arith.constant 1 : i32
    %0 = arith.muli %arg0, %c1_i32 : i32
    %1 = arith.addi %0, %arg1 : i32
    %c0_i32 = arith.constant 0 : i32
    %2 = arith.minsi %1, %c0_i32 : i32
    %c0_i32_0 = arith.constant 0 : i32
    %c0_i32_1 = arith.constant 0 : i32
    return %2, %c0_i32_0 : i32, i32
  }
  func.func @transform_2(%arg0: i32, %arg1: i32) -> (i32, i32, i32) {
    %c0_i32 = arith.constant 0 : i32
    %c0_i32_0 = arith.constant 0 : i32
    %c0_i32_1 = arith.constant 0 : i32
    return %arg0, %c0_i32, %c0_i32_0 : i32, i32, i32
  }
}

</mosaic_0001>

<llo_original>
// kernel: tpu_custom_call.1
$region0: #{tpu_custom_call.1}
  #allocation0 [shape = 'u32[]', space=smem, size = 0x4, offset = 0x4, fixed_abs, tag = 'smem constant byte address 0x4 - core index']
  #allocation1 [shape = 'u32[144,128]{1,0:T(1,128)}', space=vmem, size = 0x12000, scoped, tag = 'internal scratch']
  %s0 = inlined_call_operand.vmem [shape: f32[1,128,1], index: 0, kind: input, shape index: {}]
  %s1 = inlined_call_operand.vmem [shape: f32[8,16], index: 1, kind: input, shape index: {}]
  %s2 = inlined_call_operand.hbm [shape: f32[1,8,128], index: 2, kind: output, shape index: {}]
  %s3 = sld [smem:[#allocation0]]
  $region22: #{tpu_custom_call.1} parent=0
    _
  %s5 = ssub.s32 1, %s3
  %s6 = scalar_select 0, %s5, %s3
  $region1: #{tpu_custom_call.1} parent=0
    #allocation2 [shape = 'u8[4096]{0}', space=vmem, size = 0x1000, scoped, tag = 'output window, operand 0, single buffered']
    #allocation3 [shape = 's32[1]{0}', space=sflag, size = 0x4, scoped, tag = 'scoped memory for tpu_custom_call.1']
    %7 = vsyncpa [#allocation3], 0
    // Predicated region
    $region2: #{tpu_custom_call.1} parent=1 // pred_check
      _
    $region3: #{tpu_custom_call.1} parent=1 // pred_check_branch
      %9 = sbr.rel (0) target = $region5
    $region4: #{tpu_custom_call.1} parent=1 // pred_region
      %s10 = sadd.s32 0, 0
      %p11 = scmp.lt.s32.totalorder %s10, 0
      %s12 = scalar_select %p11, %s10, 0
      %p13 = scmp.lt.s32.totalorder %s12, 0
      %s14 = scalar_select %p13, %s12, 0
      %s15 = smul.addr %s14, 16
      %s16 = smul.addr %s15, 8
      %s17 = scalar_lea.vmem %s0, %s16
      %s18 = sadd.s32 0, 0
      %p19 = scmp.lt.s32.totalorder %s18, 0
      %s20 = scalar_select %p19, %s18, 0
    $region5: #{tpu_custom_call.1} parent=1 // pred_fallthru
      _
    // Predicated region
    $region6: #{tpu_custom_call.1} parent=1 // pred_check
      _
    $region7: #{tpu_custom_call.1} parent=1 // pred_check_branch
      %22 = sbr.rel (0) target = $region9
    $region8: #{tpu_custom_call.1} parent=1 // pred_region
      %s23 = sadd.s32 0, 0
      %p24 = scmp.lt.s32.totalorder %s23, 0
      %s25 = scalar_select %p24, %s23, 0
      %s26 = smul.u32 16, %s25
      %s27 = ssub.s32 1, %s26
      %s28 = smul.u32 128, %s27
      %p29 = scmp.lt.s32.totalorder %s26, 0
      %s30 = scalar_select %p29, %s26, 0
      %s31 = smul.addr %s30, 8
      %s32 = scalar_lea.vmem %s1, %s31
      %s33 = sadd.s32 0, 0
      %p34 = scmp.lt.s32.totalorder %s33, 0
      %s35 = scalar_select %p34, %s33, 0
      %s36 = smul.u32 16, %s35
      %s37 = ssub.s32 1, %s36
      %s38 = smul.u32 128, %s37
    $region9: #{tpu_custom_call.1} parent=1 // pred_fallthru
      _
    %s39 = sadd.s32 0, 0
    %p40 = scmp.lt.s32.totalorder %s39, 0
    %s41 = scalar_select %p40, %s39, 0
    %p42 = scmp.lt.s32.totalorder %s41, 0
    %s43 = scalar_select %p42, %s41, 0
    %s44 = smul.addr %s43, 16
    %s45 = smul.addr %s44, 8
    %s46 = scalar_lea.vmem %s0, %s45
    %s47 = sadd.s32 0, 0
    %p48 = scmp.lt.s32.totalorder %s47, 0
    %s49 = scalar_select %p48, %s47, 0
    %s50 = smul.u32 16, %s49
    %s51 = ssub.s32 1, %s50
    %s52 = smul.u32 128, %s51
    %p53 = scmp.lt.s32.totalorder %s50, 0
    %s54 = scalar_select %p53, %s50, 0
    %s55 = smul.addr %s54, 8
    %s56 = scalar_lea.vmem %s1, %s55
    %s57 = sadd.s32 0, 0
    %p58 = scmp.lt.s32.totalorder %s57, 0
    %s59 = scalar_select %p58, %s57, 0
    %p60 = scmp.lt.s32.totalorder %s59, 0
    %s61 = scalar_select %p60, %s59, 0
    %s62 = smul.addr %s61, 16
    %s63 = smul.addr %s62, 8
    %s64 = scalar_lea.vmem %s0, %s63
    %s65 = sadd.s32 0, 0
    %p66 = scmp.lt.s32.totalorder %s65, 0
    %s67 = scalar_select %p66, %s65, 0
    %s68 = sadd.s32 0, 0
    %p69 = scmp.lt.s32.totalorder %s68, 0
    %s70 = scalar_select %p69, %s68, 0
    %s71 = smul.u32 16, %s70
    %s72 = ssub.s32 1, %s71
    %s73 = smul.u32 128, %s72
    %p74 = scmp.lt.s32.totalorder %s71, 0
    %s75 = scalar_select %p74, %s71, 0
    %s76 = smul.addr %s75, 8
    %s77 = scalar_lea.vmem %s1, %s76
    %s78 = sadd.s32 0, 0
    %p79 = scmp.lt.s32.totalorder %s78, 0
    %s80 = scalar_select %p79, %s78, 0
    %s81 = smul.u32 16, %s80
    %s82 = ssub.s32 1, %s81
    %s83 = smul.u32 128, %s82
    %p84 = scmp.eq.s32.totalorder 0, 0
    // Predicated region
    $region10: #{tpu_custom_call.1} parent=1 // pred_check
      %p85 = pneg %p84
    $region11: #{tpu_custom_call.1} parent=1 // pred_check_branch
      %87 = sbr.rel (%p85) target = $region13
    $region12: #{tpu_custom_call.1} parent=1 // pred_region
      %88 = vst [vmem:[#allocation2] sm:$0xff] 0.0
    $region13: #{tpu_custom_call.1} parent=1 // pred_fallthru
      _
    %s89 = sadd.s32 0, 0
    %s90 = smul.u32 %s89, 128
    %v91 = vlaneseq
    %v92 = vand.u32 %v91, 127
    %v93 = vcvt.s32.f32 %v92
    %v94 = vlaneseq
    %v95 = vshrl.u32 %v94, 7
    %v96 = vadd.s32 %v95, 8
    %v97 = vadd.s32 %v95, 16
    %v98 = vadd.s32 %v95, 24
    %v99 = vadd.s32 %v95, 32
    %v100 = vadd.s32 %v95, 40
    %v101 = vadd.s32 %v95, 48
    %v102 = vadd.s32 %v95, 56
    %v103 = vadd.s32 %v95, 64
    %v104 = vadd.s32 %v95, 72
    %v105 = vadd.s32 %v95, 80
    %v106 = vadd.s32 %v95, 88
    %v107 = vadd.s32 %v95, 96
    %v108 = vadd.s32 %v95, 104
    %v109 = vadd.s32 %v95, 112
    %v110 = vadd.s32 %v95, 120
    %v111 = vld [vmem:[%s64] sm:$0xff]
    %v112 = vld [vmem:[%s64 + $0x8] sm:$0xff]
    %v113 = vld [vmem:[%s64 + $0x10] sm:$0xff]
    %v114 = vld [vmem:[%s64 + $0x18] sm:$0xff]
    %v115 = vld [vmem:[%s64 + $0x20] sm:$0xff]
    %v116 = vld [vmem:[%s64 + $0x28] sm:$0xff]
    %v117 = vld [vmem:[%s64 + $0x30] sm:$0xff]
    %v118 = vld [vmem:[%s64 + $0x38] sm:$0xff]
    %v119 = vld [vmem:[%s64 + $0x40] sm:$0xff]
    %v120 = vld [vmem:[%s64 + $0x48] sm:$0xff]
    %v121 = vld [vmem:[%s64 + $0x50] sm:$0xff]
    %v122 = vld [vmem:[%s64 + $0x58] sm:$0xff]
    %v123 = vld [vmem:[%s64 + $0x60] sm:$0xff]
    %v124 = vld [vmem:[%s64 + $0x68] sm:$0xff]
    %v125 = vld [vmem:[%s64 + $0x70] sm:$0xff]
    %v126 = vld [vmem:[%s64 + $0x78] sm:$0xff]
    %v127 = vld [vmem:[%s77] sm:$0xff]
    %v128 = vld [vmem:[%s77 + $0x8] sm:$0xff]
    %v129 = vld [vmem:[%s77 + $0x10] sm:$0xff]
    %v130 = vld [vmem:[%s77 + $0x18] sm:$0xff]
    %v131 = vld [vmem:[%s77 + $0x20] sm:$0xff]
    %v132 = vld [vmem:[%s77 + $0x28] sm:$0xff]
    %v133 = vld [vmem:[%s77 + $0x30] sm:$0xff]
    %v134 = vld [vmem:[%s77 + $0x38] sm:$0xff]
    %v135 = vld [vmem:[%s77 + $0x40] sm:$0xff]
    %v136 = vld [vmem:[%s77 + $0x48] sm:$0xff]
    %v137 = vld [vmem:[%s77 + $0x50] sm:$0xff]
    %v138 = vld [vmem:[%s77 + $0x58] sm:$0xff]
    %v139 = vld [vmem:[%s77 + $0x60] sm:$0xff]
    %v140 = vld [vmem:[%s77 + $0x68] sm:$0xff]
    %v141 = vld [vmem:[%s77 + $0x70] sm:$0xff]
    %v142 = vld [vmem:[%s77 + $0x78] sm:$0xff]
    %144 = vset.pattern.permute.xlu0 0
    %145 = vperm.xlu0 %144, %v111
    %v146 = vpop.permute.xlu0 %145
    %149 = vset.pattern.permute.xlu0 0
    %150 = vperm.xlu0 %149, %v112
    %v151 = vpop.permute.xlu0 %150
    %154 = vset.pattern.permute.xlu0 0
    %155 = vperm.xlu0 %154, %v113
    %v156 = vpop.permute.xlu0 %155
    %159 = vset.pattern.permute.xlu0 0
    %160 = vperm.xlu0 %159, %v114
    %v161 = vpop.permute.xlu0 %160
    %164 = vset.pattern.permute.xlu0 0
    %165 = vperm.xlu0 %164, %v115
    %v166 = vpop.permute.xlu0 %165
    %169 = vset.pattern.permute.xlu0 0
    %170 = vperm.xlu0 %169, %v116
    %v171 = vpop.permute.xlu0 %170
    %174 = vset.pattern.permute.xlu0 0
    %175 = vperm.xlu0 %174, %v117
    %v176 = vpop.permute.xlu0 %175
    %179 = vset.pattern.permute.xlu0 0
    %180 = vperm.xlu0 %179, %v118
    %v181 = vpop.permute.xlu0 %180
    %184 = vset.pattern.permute.xlu0 0
    %185 = vperm.xlu0 %184, %v119
    %v186 = vpop.permute.xlu0 %185
    %189 = vset.pattern.permute.xlu0 0
    %190 = vperm.xlu0 %189, %v120
    %v191 = vpop.permute.xlu0 %190
    %194 = vset.pattern.permute.xlu0 0
    %195 = vperm.xlu0 %194, %v121
    %v196 = vpop.permute.xlu0 %195
    %199 = vset.pattern.permute.xlu0 0
    %200 = vperm.xlu0 %199, %v122
    %v201 = vpop.permute.xlu0 %200
    %204 = vset.pattern.permute.xlu0 0
    %205 = vperm.xlu0 %204, %v123
    %v206 = vpop.permute.xlu0 %205
    %209 = vset.pattern.permute.xlu0 0
    %210 = vperm.xlu0 %209, %v124
    %v211 = vpop.permute.xlu0 %210
    %214 = vset.pattern.permute.xlu0 0
    %215 = vperm.xlu0 %214, %v125
    %v216 = vpop.permute.xlu0 %215
    %219 = vset.pattern.permute.xlu0 0
    %220 = vperm.xlu0 %219, %v126
    %v221 = vpop.permute.xlu0 %220
    %v223 = vsub.f32 %v93, %v146
    %v224 = vsub.f32 %v93, %v151
    %v225 = vsub.f32 %v93, %v156
    %v226 = vsub.f32 %v93, %v161
    %v227 = vsub.f32 %v93, %v166
    %v228 = vsub.f32 %v93, %v171
    %v229 = vsub.f32 %v93, %v176
    %v230 = vsub.f32 %v93, %v181
    %v231 = vsub.f32 %v93, %v186
    %v232 = vsub.f32 %v93, %v191
    %v233 = vsub.f32 %v93, %v196
    %v234 = vsub.f32 %v93, %v201
    %v235 = vsub.f32 %v93, %v206
    %v236 = vsub.f32 %v93, %v211
    %v237 = vsub.f32 %v93, %v216
    %v238 = vsub.f32 %v93, %v221
    %v239 = vand.u32 2147483647, %v223
    %v240 = vand.u32 2147483647, %v224
    %v241 = vand.u32 2147483647, %v225
    %v242 = vand.u32 2147483647, %v226
    %v243 = vand.u32 2147483647, %v227
    %v244 = vand.u32 2147483647, %v228
    %v245 = vand.u32 2147483647, %v229
    %v246 = vand.u32 2147483647, %v230
    %v247 = vand.u32 2147483647, %v231
    %v248 = vand.u32 2147483647, %v232
    %v249 = vand.u32 2147483647, %v233
    %v250 = vand.u32 2147483647, %v234
    %v251 = vand.u32 2147483647, %v235
    %v252 = vand.u32 2147483647, %v236
    %v253 = vand.u32 2147483647, %v237
    %v254 = vand.u32 2147483647, %v238
    %v255 = vmul.f32 %v239, -0.6931472
    %v256 = vmul.f32 %v240, -0.6931472
    %v257 = vmul.f32 %v241, -0.6931472
    %v258 = vmul.f32 %v242, -0.6931472
    %v259 = vmul.f32 %v243, -0.6931472
    %v260 = vmul.f32 %v244, -0.6931472
    %v261 = vmul.f32 %v245, -0.6931472
    %v262 = vmul.f32 %v246, -0.6931472
    %v263 = vmul.f32 %v247, -0.6931472
    %v264 = vmul.f32 %v248, -0.6931472
    %v265 = vmul.f32 %v249, -0.6931472
    %v266 = vmul.f32 %v250, -0.6931472
    %v267 = vmul.f32 %v251, -0.6931472
    %v268 = vmul.f32 %v252, -0.6931472
    %v269 = vmul.f32 %v253, -0.6931472
    %v270 = vmul.f32 %v254, -0.6931472
    %v271 = vmul.f32 %v255, 1.442695
    %v272 = vpow.pop %v271
    %v273 = vmul.f32 %v256, 1.442695
    %v274 = vpow.pop %v273
    %v275 = vmul.f32 %v257, 1.442695
    %v276 = vpow.pop %v275
    %v277 = vmul.f32 %v258, 1.442695
    %v278 = vpow.pop %v277
    %v279 = vmul.f32 %v259, 1.442695
    %v280 = vpow.pop %v279
    %v281 = vmul.f32 %v260, 1.442695
    %v282 = vpow.pop %v281
    %v283 = vmul.f32 %v261, 1.442695
    %v284 = vpow.pop %v283
    %v285 = vmul.f32 %v262, 1.442695
    %v286 = vpow.pop %v285
    %v287 = vmul.f32 %v263, 1.442695
    %v288 = vpow.pop %v287
    %v289 = vmul.f32 %v264, 1.442695
    %v290 = vpow.pop %v289
    %v291 = vmul.f32 %v265, 1.442695
    %v292 = vpow.pop %v291
    %v293 = vmul.f32 %v266, 1.442695
    %v294 = vpow.pop %v293
    %v295 = vmul.f32 %v267, 1.442695
    %v296 = vpow.pop %v295
    %v297 = vmul.f32 %v268, 1.442695
    %v298 = vpow.pop %v297
    %v299 = vmul.f32 %v269, 1.442695
    %v300 = vpow.pop %v299
    %v301 = vmul.f32 %v270, 1.442695
    %v302 = vpow.pop %v301
    %v303 = vmul.f32 %v272, %v127
    %v304 = vmul.f32 %v274, %v128
    %v305 = vmul.f32 %v276, %v129
    %v306 = vmul.f32 %v278, %v130
    %v307 = vmul.f32 %v280, %v131
    %v308 = vmul.f32 %v282, %v132
    %v309 = vmul.f32 %v284, %v133
    %v310 = vmul.f32 %v286, %v134
    %v311 = vmul.f32 %v288, %v135
    %v312 = vmul.f32 %v290, %v136
    %v313 = vmul.f32 %v292, %v137
    %v314 = vmul.f32 %v294, %v138
    %v315 = vmul.f32 %v296, %v139
    %v316 = vmul.f32 %v298, %v140
    %v317 = vmul.f32 %v300, %v141
    %v318 = vmul.f32 %v302, %v142
    %vm319 = vcmask 130048
    %v320 = vsel %vm319, %v303, 0.0
    %321 = vadd.xlane.f32.xlu0 %v320
    %v322 = vpop.xlane.xlu0 %321
    %v323 = vsel %vm319, %v304, 0.0
    %324 = vadd.xlane.f32.xlu0 %v323
    %v325 = vpop.xlane.xlu0 %324
    %v326 = vsel %vm319, %v305, 0.0
    %327 = vadd.xlane.f32.xlu0 %v326
    %v328 = vpop.xlane.xlu0 %327
    %v329 = vsel %vm319, %v306, 0.0
    %330 = vadd.xlane.f32.xlu0 %v329
    %v331 = vpop.xlane.xlu0 %330
    %v332 = vsel %vm319, %v307, 0.0
    %333 = vadd.xlane.f32.xlu0 %v332
    %v334 = vpop.xlane.xlu0 %333
    %v335 = vsel %vm319, %v308, 0.0
    %336 = vadd.xlane.f32.xlu0 %v335
    %v337 = vpop.xlane.xlu0 %336
    %v338 = vsel %vm319, %v309, 0.0
    %339 = vadd.xlane.f32.xlu0 %v338
    %v340 = vpop.xlane.xlu0 %339
    %v341 = vsel %vm319, %v310, 0.0
    %342 = vadd.xlane.f32.xlu0 %v341
    %v343 = vpop.xlane.xlu0 %342
    %v344 = vsel %vm319, %v311, 0.0
    %345 = vadd.xlane.f32.xlu0 %v344
    %v346 = vpop.xlane.xlu0 %345
    %v347 = vsel %vm319, %v312, 0.0
    %348 = vadd.xlane.f32.xlu0 %v347
    %v349 = vpop.xlane.xlu0 %348
    %v350 = vsel %vm319, %v313, 0.0
    %351 = vadd.xlane.f32.xlu0 %v350
    %v352 = vpop.xlane.xlu0 %351
    %v353 = vsel %vm319, %v314, 0.0
    %354 = vadd.xlane.f32.xlu0 %v353
    %v355 = vpop.xlane.xlu0 %354
    %v356 = vsel %vm319, %v315, 0.0
    %357 = vadd.xlane.f32.xlu0 %v356
    %v358 = vpop.xlane.xlu0 %357
    %v359 = vsel %vm319, %v316, 0.0
    %360 = vadd.xlane.f32.xlu0 %v359
    %v361 = vpop.xlane.xlu0 %360
    %v362 = vsel %vm319, %v317, 0.0
    %363 = vadd.xlane.f32.xlu0 %v362
    %v364 = vpop.xlane.xlu0 %363
    %v365 = vsel %vm319, %v318, 0.0
    %366 = vadd.xlane.f32.xlu0 %v365
    %v367 = vpop.xlane.xlu0 %366
    %v368 = vadd.f32 %v322, 1e-08
    %v369 = vadd.f32 %v325, 1e-08
    %v370 = vadd.f32 %v328, 1e-08
    %v371 = vadd.f32 %v331, 1e-08
    %v372 = vadd.f32 %v334, 1e-08
    %v373 = vadd.f32 %v337, 1e-08
    %v374 = vadd.f32 %v340, 1e-08
    %v375 = vadd.f32 %v343, 1e-08
    %v376 = vadd.f32 %v346, 1e-08
    %v377 = vadd.f32 %v349, 1e-08
    %v378 = vadd.f32 %v352, 1e-08
    %v379 = vadd.f32 %v355, 1e-08
    %v380 = vadd.f32 %v358, 1e-08
    %v381 = vadd.f32 %v361, 1e-08
    %v382 = vadd.f32 %v364, 1e-08
    %v383 = vadd.f32 %v367, 1e-08
    %v384 = vstv %s90
    %v385 = vadd.s32 %v384, %v95
    %v386 = vadd.s32 %v384, %v96
    %v387 = vadd.s32 %v384, %v97
    %v388 = vadd.s32 %v384, %v98
    %v389 = vadd.s32 %v384, %v99
    %v390 = vadd.s32 %v384, %v100
    %v391 = vadd.s32 %v384, %v101
    %v392 = vadd.s32 %v384, %v102
    %v393 = vadd.s32 %v384, %v103
    %v394 = vadd.s32 %v384, %v104
    %v395 = vadd.s32 %v384, %v105
    %v396 = vadd.s32 %v384, %v106
    %v397 = vadd.s32 %v384, %v107
    %v398 = vadd.s32 %v384, %v108
    %v399 = vadd.s32 %v384, %v109
    %v400 = vadd.s32 %v384, %v110
    %vm401 = vcmp.lt.s32.totalorder %v385, 8
    %vm402 = vcmp.lt.s32.totalorder %v386, 8
    %vm403 = vcmp.lt.s32.totalorder %v387, 8
    %vm404 = vcmp.lt.s32.totalorder %v388, 8
    %vm405 = vcmp.lt.s32.totalorder %v389, 8
    %vm406 = vcmp.lt.s32.totalorder %v390, 8
    %vm407 = vcmp.lt.s32.totalorder %v391, 8
    %vm408 = vcmp.lt.s32.totalorder %v392, 8
    %vm409 = vcmp.lt.s32.totalorder %v393, 8
    %vm410 = vcmp.lt.s32.totalorder %v394, 8
    %vm411 = vcmp.lt.s32.totalorder %v395, 8
    %vm412 = vcmp.lt.s32.totalorder %v396, 8
    %vm413 = vcmp.lt.s32.totalorder %v397, 8
    %vm414 = vcmp.lt.s32.totalorder %v398, 8
    %vm415 = vcmp.lt.s32.totalorder %v399, 8
    %vm416 = vcmp.lt.s32.totalorder %v400, 8
    %v417 = vsel %vm401, %v368, 1.0
    %v418 = vsel %vm402, %v369, 1.0
    %v419 = vsel %vm403, %v370, 1.0
    %v420 = vsel %vm404, %v371, 1.0
    %v421 = vsel %vm405, %v372, 1.0
    %v422 = vsel %vm406, %v373, 1.0
    %v423 = vsel %vm407, %v374, 1.0
    %v424 = vsel %vm408, %v375, 1.0
    %v425 = vsel %vm409, %v376, 1.0
    %v426 = vsel %vm410, %v377, 1.0
    %v427 = vsel %vm411, %v378, 1.0
    %v428 = vsel %vm412, %v379, 1.0
    %v429 = vsel %vm413, %v380, 1.0
    %v430 = vsel %vm414, %v381, 1.0
    %v431 = vsel %vm415, %v382, 1.0
    %v432 = vsel %vm416, %v383, 1.0
    %v433 = vlog2.pop %v417
    %v434 = vmul.f32 %v433, 0.6931472
    %v435 = vlog2.pop %v418
    %v436 = vmul.f32 %v435, 0.6931472
    %v437 = vlog2.pop %v419
    %v438 = vmul.f32 %v437, 0.6931472
    %v439 = vlog2.pop %v420
    %v440 = vmul.f32 %v439, 0.6931472
    %v441 = vlog2.pop %v421
    %v442 = vmul.f32 %v441, 0.6931472
    %v443 = vlog2.pop %v422
    %v444 = vmul.f32 %v443, 0.6931472
    %v445 = vlog2.pop %v423
    %v446 = vmul.f32 %v445, 0.6931472
    %v447 = vlog2.pop %v424
    %v448 = vmul.f32 %v447, 0.6931472
    %v449 = vlog2.pop %v425
    %v450 = vmul.f32 %v449, 0.6931472
    %v451 = vlog2.pop %v426
    %v452 = vmul.f32 %v451, 0.6931472
    %v453 = vlog2.pop %v427
    %v454 = vmul.f32 %v453, 0.6931472
    %v455 = vlog2.pop %v428
    %v456 = vmul.f32 %v455, 0.6931472
    %v457 = vlog2.pop %v429
    %v458 = vmul.f32 %v457, 0.6931472
    %v459 = vlog2.pop %v430
    %v460 = vmul.f32 %v459, 0.6931472
    %v461 = vlog2.pop %v431
    %v462 = vmul.f32 %v461, 0.6931472
    %v463 = vlog2.pop %v432
    %v464 = vmul.f32 %v463, 0.6931472
    %v465 = vsub.f32 0.0, %v434
    %v466 = vsub.f32 0.0, %v436
    %v467 = vsub.f32 0.0, %v438
    %v468 = vsub.f32 0.0, %v440
    %v469 = vsub.f32 0.0, %v442
    %v470 = vsub.f32 0.0, %v444
    %v471 = vsub.f32 0.0, %v446
    %v472 = vsub.f32 0.0, %v448
    %v473 = vsub.f32 0.0, %v450
    %v474 = vsub.f32 0.0, %v452
    %v475 = vsub.f32 0.0, %v454
    %v476 = vsub.f32 0.0, %v456
    %v477 = vsub.f32 0.0, %v458
    %v478 = vsub.f32 0.0, %v460
    %v479 = vsub.f32 0.0, %v462
    %v480 = vsub.f32 0.0, %v464
    %vm481 = vcmask 7168
    %v482 = vsel %vm481, %v465, 0.0
    %v483 = vsel %vm481, %v466, 0.0
    %v484 = vadd.f32 %v482, %v483
    %v485 = vsel %vm481, %v467, 0.0
    %v486 = vadd.f32 %v484, %v485
    %v487 = vsel %vm481, %v468, 0.0
    %v488 = vadd.f32 %v486, %v487
    %v489 = vsel %vm481, %v469, 0.0
    %v490 = vadd.f32 %v488, %v489
    %v491 = vsel %vm481, %v470, 0.0
    %v492 = vadd.f32 %v490, %v491
    %v493 = vsel %vm481, %v471, 0.0
    %v494 = vadd.f32 %v492, %v493
    %v495 = vsel %vm481, %v472, 0.0
    %v496 = vadd.f32 %v494, %v495
    %v497 = vsel %vm481, %v473, 0.0
    %v498 = vadd.f32 %v496, %v497
    %v499 = vsel %vm481, %v474, 0.0
    %v500 = vadd.f32 %v498, %v499
    %v501 = vsel %vm481, %v475, 0.0
    %v502 = vadd.f32 %v500, %v501
    %v503 = vsel %vm481, %v476, 0.0
    %v504 = vadd.f32 %v502, %v503
    %v505 = vsel %vm481, %v477, 0.0
    %v506 = vadd.f32 %v504, %v505
    %v507 = vsel %vm481, %v478, 0.0
    %v508 = vadd.f32 %v506, %v507
    %v509 = vsel %vm481, %v479, 0.0
    %v510 = vadd.f32 %v508, %v509
    %v511 = vsel %vm481, %v480, 0.0
    %v512 = vadd.f32 %v510, %v511
    %513 = vadd.xlane.f32.xlu0 %v512
    %v514 = vpop.xlane.xlu0 %513
    %v515 = vrot.slane %v514, 4
    %v516 = vadd.f32 %v514, %v515
    %v517 = vrot.slane %v516, 2
    %v518 = vadd.f32 %v516, %v517
    %v519 = vrot.slane %v518, 1
    %v520 = vadd.f32 %v518, %v519
    %s521 = vtos %v520
    %s522 = sadd.f32 %s521, 0.0
    %v523 = vld [vmem:[#allocation2] sm:$0xff]
    %v524 = vstv %s522
    %v525 = vadd.f32 %v523, %v524
    %526 = vst [vmem:[#allocation2] sm:$0xff] %v525
    // Predicated region
    $region14: #{tpu_custom_call.1} parent=1 // pred_check
      _
    $region15: #{tpu_custom_call.1} parent=1 // pred_check_branch
      %528 = sbr.rel (0) target = $region17
    $region16: #{tpu_custom_call.1} parent=1 // pred_region
      %s530 = ssub.s32 128, 128
      %531 = vsyncadd [#allocation3], %s530
      %s533 = sshll.u32 [#allocation2], 4
      %s534 = int_to_ptr.vmem [resolvable:$true] %s533
      %536 = dma.vmem_to_hbm [thread:$0]  %s534, 128, %s2, [#allocation3]
    $region17: #{tpu_custom_call.1} parent=1 // pred_fallthru
      _
    // Predicated region
    $region18: #{tpu_custom_call.1} parent=1 // pred_check
      _
    $region19: #{tpu_custom_call.1} parent=1 // pred_check_branch
      %538 = sbr.rel (0) target = $region21
    $region20: #{tpu_custom_call.1} parent=1 // pred_region
      %539 = dma.done [#allocation3], 128
    $region21: #{tpu_custom_call.1} parent=1 // pred_fallthru
      _
    %540 = vsyncpa [#allocation3], 1

</llo_original>
